<compile_context>
chip_gen: v6e
topology: v6e:2x2x1
jax: 0.10.0
libtpu: 0.0.40
codegen_flags: <defaults>
</compile_context>

<pallas_src>
import functools

import jax
import jax.numpy as jnp
from jax import lax
from jax.experimental import pallas as pl
from jax.experimental.pallas import tpu as pltpu


def _round_up(x: int, m: int) -> int:
    return (x + m - 1) // m * m


def _cdiv(a: int, b: int) -> int:
    return (a + b - 1) // b


_GOLDEN = 0x9E3779B1
_MIX1 = 0x7FEB352D
_MIX2 = 0x846CA68B


def _hash_u32(x):
    # murmur3-style 32-bit finalizer (good avalanche); all ops wrap mod 2^32.
    x = x ^ (x >> jnp.uint32(16))
    x = x * jnp.uint32(_MIX1)
    x = x ^ (x >> jnp.uint32(15))
    x = x * jnp.uint32(_MIX2)
    x = x ^ (x >> jnp.uint32(16))
    return x


# ----------------------------- kernels ------------------------------------


def _train_kernel(seed_ref, x_ref, w_ref, b_ref, o_ref, *, p, feat_dim, tile_b):
    x = x_ref[...]

    # Stateless counter-based PRNG: bits = hash(global element index, seed).
    # Tile-size independent; pure jnp/lax ops (works on Mosaic and interpret).
    row_off = pl.program_id(0) * tile_b
    rows = lax.broadcasted_iota(jnp.int32, x.shape, 0) + row_off
    cols = lax.broadcasted_iota(jnp.int32, x.shape, 1)
    idx = rows.astype(jnp.uint32) * jnp.uint32(feat_dim) + cols.astype(jnp.uint32)
    seed = seed_ref[0].astype(jnp.uint32)
    bits = _hash_u32(
        idx * jnp.uint32(_GOLDEN) + seed * jnp.uint32(_MIX2) + jnp.uint32(1)
    )
    # Top 24 bits convert exactly to f32 in [0, 2^24); drop iff below p * 2^24.
    u24 = (bits >> jnp.uint32(8)).astype(jnp.int32).astype(jnp.float32)
    keep = u24 >= jnp.float32(p * float(1 << 24))
    x_masked = jnp.where(keep, x, jnp.zeros_like(x))

    # 1/(1-p) inverted-dropout scale is pre-folded into w_ref by the wrapper.
    acc = jnp.dot(x_masked, w_ref[...], preferred_element_type=jnp.float32)
    acc = acc + b_ref[...].astype(jnp.float32)
    o_ref[...] = acc.astype(o_ref.dtype)


def _infer_kernel(x_ref, w_ref, b_ref, o_ref):
    acc = jnp.dot(x_ref[...], w_ref[...], preferred_element_type=jnp.float32)
    acc = acc + b_ref[...].astype(jnp.float32)
    o_ref[...] = acc.astype(o_ref.dtype)


# ----------------------------- wrapper -------------------------------------


def regression_head_forward(
    x,
    weight,
    bias,
    *,
    dropout_p: float = 0.02,
    training: bool = False,
    seed: int = 0,
):
    """y = Linear(Dropout(x)).

    x: (B, D) activations.
    weight: (O, D) torch-layout linear weight.
    bias: (O,) linear bias.
    """
    B, D = x.shape
    O = weight.shape[0]
    out_dtype = x.dtype

    # Degenerate dropout: everything dropped -> output is exactly the bias.
    if training and dropout_p >= 1.0:
        return jnp.broadcast_to(bias.astype(out_dtype), (B, O))

    use_dropout = training and dropout_p > 0.0

    # Pre-transpose W to (D, O); fold the 1/(1-p) scale into W (NOT the bias)
    # on the training path, since (mask*x/(1-p)) @ W.T == (mask*x) @ (W.T/(1-p)).
    w_t = weight.T
    if use_dropout:
        w_t = w_t * jnp.asarray(1.0 / (1.0 - dropout_p), dtype=w_t.dtype)
    b_2d = bias.reshape(1, O)

    x_item = jnp.dtype(x.dtype).itemsize
    w_item = jnp.dtype(w_t.dtype).itemsize
    o_item = jnp.dtype(out_dtype).itemsize
    d_lanes = _round_up(D, 128)   # in-VMEM lane padding
    o_lanes = _round_up(O, 128)

    # Generation-aware VMEM budget (~75% of physical: ~96 MiB v5e/v6e, ~48 MiB v7x).
    try:
        vmem_cap = int(pltpu.get_tpu_info().vmem_capacity_bytes)
    except Exception:
        vmem_cap = 64 * 1024 * 1024
    vmem_budget = vmem_cap * 3 // 4

    def vmem_need(tb: int) -> int:
        return (
            2 * _round_up(tb, 8) * d_lanes * x_item      # x tile, double-buffered
            + 2 * _round_up(D, 8) * o_lanes * w_item     # W (pipeline double-buffers even constant blocks)
            + 2 * 8 * o_lanes * w_item                   # bias (ditto)
            + 2 * _round_up(tb, 8) * o_lanes * o_item    # out tile, double-buffered
        )

    # Batch tile sized by bytes (~6 MiB of x) to amortize ~0.35us/step overhead;
    # capped so large B still gives >=2 tiles (v7x megacore), backed off for VMEM.
    target_tile_bytes = 6 * 1024 * 1024
    row_bytes = d_lanes * x_item
    tile_b = max(8, (target_tile_bytes // row_bytes) // 8 * 8)
    tile_b = min(tile_b, _round_up(B, 8))
    if B >= 128:
        tile_b = min(tile_b, _round_up(_cdiv(B, 2), 8))
    while tile_b > 8 and vmem_need(tile_b) > vmem_budget:
        tile_b = max(8, _round_up(tile_b // 2, 8))

    # No pre-padding of x: boundary-block garbage rows are per-row independent
    # and masked on the output write, so they never contaminate valid rows.
    grid = (_cdiv(B, tile_b),)

    vmem_limit = int(min(vmem_budget, vmem_need(tile_b) * 3 // 2 + (4 << 20)))
    compiler_params = pltpu.CompilerParams(
        dimension_semantics=("parallel",),   # v7x: 2 TCs split the batch tiles
        vmem_limit_bytes=vmem_limit,
    )
    out_shape = jax.ShapeDtypeStruct((B, O), out_dtype)

    if use_dropout:
        kernel = functools.partial(
            _train_kernel, p=float(dropout_p), feat_dim=D, tile_b=tile_b
        )
        grid_spec = pltpu.PrefetchScalarGridSpec(
            num_scalar_prefetch=1,
            grid=grid,
            in_specs=[
                pl.BlockSpec((tile_b, D), lambda i, seed_ref: (i, 0)),   # stream x
                pl.BlockSpec((D, O), lambda i, seed_ref: (0, 0)),        # W resident
                pl.BlockSpec((1, O), lambda i, seed_ref: (0, 0)),        # b resident
            ],
            out_specs=pl.BlockSpec((tile_b, O), lambda i, seed_ref: (i, 0)),
        )
        seed_arr = jnp.asarray([seed], dtype=jnp.int32)
        y = pl.pallas_call(
            kernel,
            out_shape=out_shape,
            grid_spec=grid_spec,
            compiler_params=compiler_params,
        )(seed_arr, x, w_t, b_2d)
    else:
        # Inference fast path: no mask generation at all.
        grid_spec = pltpu.PrefetchScalarGridSpec(
            num_scalar_prefetch=0,
            grid=grid,
            in_specs=[
                pl.BlockSpec((tile_b, D), lambda i: (i, 0)),
                pl.BlockSpec((D, O), lambda i: (0, 0)),
                pl.BlockSpec((1, O), lambda i: (0, 0)),
            ],
            out_specs=pl.BlockSpec((tile_b, O), lambda i: (i, 0)),
        )
        y = pl.pallas_call(
            _infer_kernel,
            out_shape=out_shape,
            grid_spec=grid_spec,
            compiler_params=compiler_params,
        )(x, w_t, b_2d)

    return y


# ----------------------------- example -------------------------------------


if __name__ == "__main__":
    key = jax.random.PRNGKey(0)
    k_x, k_w, k_b = jax.random.split(key, 3)

    batch, dim_size, num_outputs = 16, 32, 3
    x = jax.random.normal(k_x, (batch, dim_size), dtype=jnp.float32)
    weight = 0.1 * jax.random.normal(k_w, (num_outputs, dim_size), dtype=jnp.float32)
    bias = 0.1 * jax.random.normal(k_b, (num_outputs,), dtype=jnp.float32)

    # Eval mode (dropout is identity): exact check vs pure-JAX reference.
    y_eval = jax.block_until_ready(
        regression_head_forward(x, weight, bias, training=False)
    )
    y_ref = x @ weight.T + bias
    assert y_eval.shape == (batch, num_outputs)
    assert jnp.allclose(y_eval, y_ref, atol=1e-5, rtol=1e-5)

    # Training mode: exercises the hash-based dropout path.
    # TODO(synk): torch's dropout RNG bit-stream is not reproduced; a stateless
    # counter-based hash PRNG is used instead (same keep-probability semantics).
    y_train = jax.block_until_ready(
        regression_head_forward(x, weight, bias, training=True, seed=1234)
    )
    assert y_train.shape == (batch, num_outputs)
    assert bool(jnp.all(jnp.isfinite(y_train)))

    print("KERNEL_OK")
</pallas_src>

<mosaic_0001>
module attributes {stable_mosaic.version = 11 : i64} {
  func.func @_infer_kernel(%arg0: i32, %arg1: memref<16x32xf32, #tpu.memory_space<vmem>>, %arg2: memref<32x3xf32, #tpu.memory_space<vmem>>, %arg3: memref<1x3xf32, #tpu.memory_space<vmem>>, %arg4: memref<16x3xf32, #tpu.memory_space<vmem>>) attributes {dimension_semantics = [#tpu.dimension_semantics<parallel>], iteration_bounds = array<i64: 1>, scalar_prefetch = 0 : i64, scratch_operands = 0 : i64, tpu.core_type = #tpu.core_type<tc>, window_params = [{transform_indices = @transform_0, window_bounds = array<i64: 16, 32>}, {pipeline_mode = #tpu.pipeline_mode<synchronous>, transform_indices = @transform_1, window_bounds = array<i64: 32, 3>}, {pipeline_mode = #tpu.pipeline_mode<synchronous>, transform_indices = @transform_2, window_bounds = array<i64: 1, 3>}, {transform_indices = @transform_3, window_bounds = array<i64: 16, 3>}]} {
    %c0 = arith.constant 0 : index
    %c0_0 = arith.constant 0 : index
    %0 = vector.load %arg1[%c0, %c0_0] : memref<16x32xf32, #tpu.memory_space<vmem>>, vector<16x32xf32>
    %c0_1 = arith.constant 0 : index
    %c0_2 = arith.constant 0 : index
    %1 = vector.load %arg2[%c0_1, %c0_2] : memref<32x3xf32, #tpu.memory_space<vmem>>, vector<32x3xf32>
    %cst = arith.constant dense<0.000000e+00> : vector<16x3xf32>
    %2 = tpu.matmul %0, %1, %cst {dimension_numbers = #tpu.dot_dimension_numbers<[1], [0], [0], [1], [0, 0, 1, 1], [], []>} : vector<16x32xf32>, vector<32x3xf32>, vector<16x3xf32> -> vector<16x3xf32>
    %c0_3 = arith.constant 0 : index
    %c0_4 = arith.constant 0 : index
    %3 = vector.load %arg3[%c0_3, %c0_4] : memref<1x3xf32, #tpu.memory_space<vmem>>, vector<1x3xf32>
    %4 = vector.broadcast %3 : vector<1x3xf32> to vector<16x3xf32>
    %5 = arith.addf %2, %4 : vector<16x3xf32>
    %c0_5 = arith.constant 0 : index
    %c0_6 = arith.constant 0 : index
    %6 = vector.load %arg4[%c0_5, %c0_6] : memref<16x3xf32, #tpu.memory_space<vmem>>, vector<16x3xf32>
    tpu.vector_store %arg4[%c0_5, %c0_6], %5 {strides = array<i32>} : memref<16x3xf32, #tpu.memory_space<vmem>>, vector<16x3xf32>,
    return
  }
  func.func @transform_0(%arg0: i32) -> (i32, i32) {
    %c0_i32 = arith.constant 0 : i32
    %c0_i32_0 = arith.constant 0 : i32
    return %arg0, %c0_i32 : i32, i32
  }
  func.func @transform_1(%arg0: i32) -> (i32, i32) {
    %c0_i32 = arith.constant 0 : i32
    %c0_i32_0 = arith.constant 0 : i32
    %c0_i32_1 = arith.constant 0 : i32
    return %c0_i32, %c0_i32_0 : i32, i32
  }
  func.func @transform_2(%arg0: i32) -> (i32, i32) {
    %c0_i32 = arith.constant 0 : i32
    %c0_i32_0 = arith.constant 0 : i32
    %c0_i32_1 = arith.constant 0 : i32
    return %c0_i32, %c0_i32_0 : i32, i32
  }
  func.func @transform_3(%arg0: i32) -> (i32, i32) {
    %c0_i32 = arith.constant 0 : i32
    %c0_i32_0 = arith.constant 0 : i32
    return %arg0, %c0_i32 : i32, i32
  }
}

</mosaic_0001>

<llo_original>
// kernel: tpu_custom_call.1
$region0: #{tpu_custom_call.1}
  #allocation0 [shape = 'u32[]', space=smem, size = 0x4, offset = 0x4, fixed_abs, tag = 'smem constant byte address 0x4 - core index']
  #allocation1 [shape = 'u32[144,128]{1,0:T(1,128)}', space=vmem, size = 0x12000, scoped, tag = 'internal scratch']
  %s0 = inlined_call_operand.vmem [shape: f32[16,32], index: 0, kind: input, shape index: {}]
  %s1 = inlined_call_operand.vmem [shape: f32[32,3], index: 1, kind: input, shape index: {}]
  %s2 = inlined_call_operand.vmem [shape: f32[1,3], index: 2, kind: input, shape index: {}]
  %s3 = inlined_call_operand.vmem [shape: f32[16,3], index: 3, kind: output, shape index: {}]
  %s4 = sld [smem:[#allocation0]]
  $region22: #{tpu_custom_call.1} parent=0
    _
  %s6 = ssub.s32 1, %s4
  %s7 = scalar_select 0, %s6, %s4
  // Predicated region
  $region2: #{tpu_custom_call.1} parent=0 // pred_check
    _
  $region3: #{tpu_custom_call.1} parent=0 // pred_check_branch
    %9 = sbr.rel (0) target = $region5
  $region4: #{tpu_custom_call.1} parent=0 // pred_region
    _
  $region5: #{tpu_custom_call.1} parent=0 // pred_fallthru
    _
  // Predicated region
  $region6: #{tpu_custom_call.1} parent=0 // pred_check
    _
  $region7: #{tpu_custom_call.1} parent=0 // pred_check_branch
    %11 = sbr.rel (0) target = $region9
  $region8: #{tpu_custom_call.1} parent=0 // pred_region
    _
  $region9: #{tpu_custom_call.1} parent=0 // pred_fallthru
    _
  // Predicated region
  $region10: #{tpu_custom_call.1} parent=0 // pred_check
    _
  $region11: #{tpu_custom_call.1} parent=0 // pred_check_branch
    %13 = sbr.rel (0) target = $region13
  $region12: #{tpu_custom_call.1} parent=0 // pred_region
    _
  $region13: #{tpu_custom_call.1} parent=0 // pred_fallthru
    _
  %v14 = vld [vmem:[%s0] sm:$0xff]
  %v15 = vld [vmem:[%s0 + $0x8] sm:$0xff]
  %v16 = vld [vmem:[%s1] sm:$0xff]
  %v17 = vld [vmem:[%s1 + $0x8] sm:$0xff]
  %v18 = vld [vmem:[%s1 + $0x10] sm:$0xff]
  %v19 = vld [vmem:[%s1 + $0x18] sm:$0xff]
  %v20 = vld [vmem:[%s2] sm:$0x1]
  %v22 = vlaneseq
  %v23 = vshrl.u32 %v22, 7
  %v24 = vsub.s32 0, %v23
  %v25 = vrot.slane %v20, %v24
  %vm27 = vcmask 261120
  %v29 = vsel %vm27, %v14, 0
  %v32 = vsel %vm27, %v15, 0
  %34 = vmatprep.subr.mxu0 0.0
  %35 = vmatpush1.msra.mxu0 0.0
  %36 = vmatprep.subr.mxu0 0.0
  %37 = vmatpush1.msra.mxu0 0.0
  %38 = vmatprep.subr.mxu0 0.0
  %39 = vmatpush1.msra.mxu0 0.0
  %40 = vmatprep.subr.mxu0 0.0
  %41 = vmatpush1.msra.mxu0 0.0
  %42 = vmatprep.subr.mxu0 0.0
  %43 = vmatpush1.msra.mxu0 0.0
  %44 = vmatprep.subr.mxu0 0.0
  %45 = vmatpush1.msra.mxu0 0.0
  %46 = vmatprep.subr.mxu0 0.0
  %47 = vmatpush1.msra.mxu0 0.0
  %48 = vmatprep.subr.mxu0 0.0
  %49 = vmatpush1.msra.mxu0 0.0
  %50 = vmatprep.subr.mxu0 0.0
  %51 = vmatpush1.msra.mxu0 0.0
  %52 = vmatprep.subr.mxu0 0.0
  %53 = vmatpush1.msra.mxu0 0.0
  %54 = vmatprep.subr.mxu0 0.0
  %55 = vmatpush1.msra.mxu0 0.0
  %56 = vmatprep.subr.mxu0 0.0
  %57 = vmatpush1.msra.mxu0 0.0
  %58 = vmatprep.subr.mxu0 0.0
  %59 = vmatpush1.msra.mxu0 %v19
  %60 = vmatprep.subr.mxu0 0.0
  %61 = vmatpush1.msra.mxu0 %v18
  %62 = vmatprep.subr.mxu0 0.0
  %63 = vmatpush1.msra.mxu0 %v17
  %64 = vmatprep.subr.mxu0 0.0
  %65 = vmatpush1.msra.mxu0 %v16
  %66 = vmatprep.subr.mxu0 0.0
  %67 = vmatpush2.msra.mxu0 0.0
  %68 = vmatprep.subr.mxu0 0.0
  %69 = vmatpush2.msra.mxu0 0.0
  %70 = vmatprep.subr.mxu0 0.0
  %71 = vmatpush2.msra.mxu0 0.0
  %72 = vmatprep.subr.mxu0 0.0
  %73 = vmatpush2.msra.mxu0 0.0
  %74 = vmatprep.subr.mxu0 0.0
  %75 = vmatpush2.msra.mxu0 0.0
  %76 = vmatprep.subr.mxu0 0.0
  %77 = vmatpush2.msra.mxu0 0.0
  %78 = vmatprep.subr.mxu0 0.0
  %79 = vmatpush2.msra.mxu0 0.0
  %80 = vmatprep.subr.mxu0 0.0
  %81 = vmatpush2.msra.mxu0 0.0
  %82 = vmatprep.subr.mxu0 0.0
  %83 = vmatpush2.msra.mxu0 0.0
  %84 = vmatprep.subr.mxu0 0.0
  %85 = vmatpush2.msra.mxu0 0.0
  %86 = vmatprep.subr.mxu0 0.0
  %87 = vmatpush2.msra.mxu0 0.0
  %88 = vmatprep.subr.mxu0 0.0
  %89 = vmatpush2.msra.mxu0 0.0
  %90 = vmatprep.subr.mxu0 0.0
  %91 = vmatpush2.msra.mxu0 0.0
  %92 = vmatprep.subr.mxu0 0.0
  %93 = vmatpush2.msra.mxu0 0.0
  %94 = vmatprep.subr.mxu0 0.0
  %95 = vmatpush2.msra.mxu0 0.0
  %96 = vmatprep.subr.mxu0 0.0
  %97 = vmatpush2.msra.mxu0 0.0
  %98 = vmatprep.mubr.f32.mxu0 0.0
  %99 = vmatmul.mubr.f32.gmra.mxu0 %v29
  %v100 = vpop.f32.mrf.mxu0
  %v101 = vadd.f32 %v25, %v100
  %v102 = vpop.f32.mrf.mxu0
  %103 = vmatprep.mubr.f32.mxu0 0.0
  %104 = vmatmul.mubr.f32.gmra.mxu0 %v32
  %v105 = vpop.f32.mrf.mxu0
  %v106 = vadd.f32 %v25, %v105
  %v107 = vpop.f32.mrf.mxu0
  %108 = vdwg.mxu0
  %vm109 = vcmask 23552
  %110 = vst.msk [vmem:[%s3] sm:$0xff] %vm109, %v101
  %111 = vst.msk [vmem:[%s3 + $0x8] sm:$0xff] %vm109, %v106
  // Predicated region
  $region14: #{tpu_custom_call.1} parent=0 // pred_check
    _
  $region15: #{tpu_custom_call.1} parent=0 // pred_check_branch
    %113 = sbr.rel (0) target = $region17
  $region16: #{tpu_custom_call.1} parent=0 // pred_region
    _
  $region17: #{tpu_custom_call.1} parent=0 // pred_fallthru
    _
  // Predicated region
  $region18: #{tpu_custom_call.1} parent=0 // pred_check
    _
  $region19: #{tpu_custom_call.1} parent=0 // pred_check_branch
    %115 = sbr.rel (0) target = $region21
  $region20: #{tpu_custom_call.1} parent=0 // pred_region
    _
  $region21: #{tpu_custom_call.1} parent=0 // pred_fallthru
    _

</llo_original>
